<compile_context>
chip_gen: v5e
topology: v5e:2x2
jax: 0.10.0
libtpu: 0.0.40
codegen_flags: <defaults>
</compile_context>

<pallas_src>
import functools

import jax
import jax.numpy as jnp
from jax.experimental import pallas as pl
from jax.experimental.pallas import tpu as pltpu

# Small, module-consistent hyperparameters.
INPUT_SIZE = 64
HIDDEN = 32
NUM_LAYERS = 2
NUM_CLASSES = 2
BATCH = 8

_VMEM = pl.BlockSpec(memory_space=pltpu.MemorySpace.VMEM)


# ------------------------------ fused kernel -------------------------------- #

def _birnn_fused_kernel(*refs, num_layers, hidden):
    """Fused BiLSTM (seq_len=1, zero state) + FC head.

    refs = (x, w_l0, b_l0, ..., w_l{L-1}, b_l{L-1}, fc_w, fc_b, out)
      x      : (B, Din0)
      w_l*   : (Din, 6H)  packed columns [i_f, i_b, g_f, g_b, o_f, o_b]
      b_l*   : (1, 6H)    (b_ih + b_hh), same packing, forget gate dropped
      fc_w   : (2H, C)
      fc_b   : (1, C)
      out    : (B, C)
    """
    x_ref = refs[0]
    fc_w_ref, fc_b_ref, out_ref = refs[-3], refs[-2], refs[-1]
    layer_refs = refs[1:-3]

    h2 = 2 * hidden
    h = x_ref[...]                                         # (B, Din0), f32
    for li in range(num_layers):
        w_ref = layer_refs[2 * li]
        b_ref = layer_refs[2 * li + 1]
        gates = jnp.dot(h, w_ref[...],
                        preferred_element_type=jnp.float32) + b_ref[...]   # (B, 6H)
        i_g = jax.nn.sigmoid(gates[:, 0 * h2:1 * h2])      # [i_fwd | i_bwd]
        g_g = jnp.tanh(gates[:, 1 * h2:2 * h2])            # [g_fwd | g_bwd]
        o_g = jax.nn.sigmoid(gates[:, 2 * h2:3 * h2])      # [o_fwd | o_bwd]
        # h comes out already laid out as concat(h_fwd, h_bwd) -> next layer input.
        h = o_g * jnp.tanh(i_g * g_g)                      # (B, 2H)

    out_ref[...] = (jnp.dot(h, fc_w_ref[...],
                            preferred_element_type=jnp.float32)
                    + fc_b_ref[...]).astype(out_ref.dtype)


@jax.jit
def birnn_forward(packed, x):
    B = x.shape[0]
    args = [x.astype(jnp.float32)]
    for li in range(NUM_LAYERS):
        args.append(packed[f"w_l{li}"])
        args.append(packed[f"b_l{li}"])
    args += [packed["fc_w_t"], packed["fc_b"]]

    kernel = functools.partial(_birnn_fused_kernel,
                               num_layers=NUM_LAYERS, hidden=HIDDEN)
    return pl.pallas_call(
        kernel,
        out_shape=jax.ShapeDtypeStruct((B, NUM_CLASSES), jnp.float32),
        in_specs=[_VMEM] * len(args),
        out_specs=_VMEM,
    )(*args)


# ------------------------------ parameters ---------------------------------- #

def init_raw_params(key):
    """Raw PyTorch-style params: uniform(-1/sqrt(H), 1/sqrt(H)), gate order [i,f,g,o]."""
    raw = {}
    k = 1.0 / jnp.sqrt(jnp.float32(HIDDEN))
    keys = jax.random.split(key, NUM_LAYERS * 2 * 4 + 2)
    ki = 0
    for layer in range(NUM_LAYERS):
        d_in = INPUT_SIZE if layer == 0 else 2 * HIDDEN
        for suffix in ("", "_rev"):
            raw[f"w_ih_l{layer}{suffix}"] = jax.random.uniform(
                keys[ki], (4 * HIDDEN, d_in), minval=-k, maxval=k, dtype=jnp.float32); ki += 1
            # W_hh is sampled for parity with nn.LSTM but never used (h0 == 0).
            raw[f"w_hh_l{layer}{suffix}"] = jax.random.uniform(
                keys[ki], (4 * HIDDEN, HIDDEN), minval=-k, maxval=k, dtype=jnp.float32); ki += 1
            raw[f"b_ih_l{layer}{suffix}"] = jax.random.uniform(
                keys[ki], (4 * HIDDEN,), minval=-k, maxval=k, dtype=jnp.float32); ki += 1
            raw[f"b_hh_l{layer}{suffix}"] = jax.random.uniform(
                keys[ki], (4 * HIDDEN,), minval=-k, maxval=k, dtype=jnp.float32); ki += 1
    kfc = 1.0 / jnp.sqrt(jnp.float32(2 * HIDDEN))
    raw["fc_w"] = jax.random.uniform(keys[ki], (NUM_CLASSES, 2 * HIDDEN),
                                     minval=-kfc, maxval=kfc, dtype=jnp.float32); ki += 1
    raw["fc_b"] = jax.random.uniform(keys[ki], (NUM_CLASSES,),
                                     minval=-kfc, maxval=kfc, dtype=jnp.float32)
    return raw


def pack_params(raw):
    """Host-side packing for the fused kernel.

    Per layer: columns [i_fwd, i_bwd, g_fwd, g_bwd, o_fwd, o_bwd] (each width H),
    forget-gate rows dropped (c0 == 0), fwd/bwd fused into one matmul.
    """
    H = HIDDEN
    packed = {}
    for layer in range(NUM_LAYERS):
        blocks_w, blocks_b = [], []
        for row0 in (0 * H, 2 * H, 3 * H):            # PyTorch rows: i, g, o
            for suffix in ("", "_rev"):
                w_ih = raw[f"w_ih_l{layer}{suffix}"]
                bias = raw[f"b_ih_l{layer}{suffix}"] + raw[f"b_hh_l{layer}{suffix}"]
                blocks_w.append(w_ih[row0:row0 + H, :].T)        # (Din, H)
                blocks_b.append(bias[row0:row0 + H])
        packed[f"w_l{layer}"] = jnp.concatenate(blocks_w, axis=1)      # (Din, 6H)
        packed[f"b_l{layer}"] = jnp.concatenate(blocks_b)[None, :]     # (1, 6H)
    packed["fc_w_t"] = raw["fc_w"].T                                   # (2H, C)
    packed["fc_b"] = raw["fc_b"][None, :]                              # (1, C)
    return packed


# ------------------------- pure-JAX reference (raw) -------------------------- #

def birnn_reference(raw, x):
    """Faithful single-step BiLSTM (full [i,f,g,o] gates, zero h0/c0) + FC."""
    H = HIDDEN
    inp = x.astype(jnp.float32)
    for layer in range(NUM_LAYERS):
        outs = []
        for suffix in ("", "_rev"):
            gates = (inp @ raw[f"w_ih_l{layer}{suffix}"].T
                     + raw[f"b_ih_l{layer}{suffix}"] + raw[f"b_hh_l{layer}{suffix}"])
            i_g = jax.nn.sigmoid(gates[:, 0 * H:1 * H])
            f_g = jax.nn.sigmoid(gates[:, 1 * H:2 * H])
            g_g = jnp.tanh(gates[:, 2 * H:3 * H])
            o_g = jax.nn.sigmoid(gates[:, 3 * H:4 * H])
            c = f_g * jnp.zeros_like(f_g) + i_g * g_g       # c0 == 0
            outs.append(o_g * jnp.tanh(c))
        inp = jnp.concatenate(outs, axis=-1)
    return inp @ raw["fc_w"].T + raw["fc_b"]


# ---------------------------------- main ------------------------------------ #

if __name__ == "__main__":
    key = jax.random.PRNGKey(0)
    kp, kx = jax.random.split(key)

    raw = init_raw_params(kp)
    packed = pack_params(raw)
    x = jax.random.normal(kx, (BATCH, INPUT_SIZE), dtype=jnp.float32)

    out = jax.block_until_ready(birnn_forward(packed, x))
    assert out.shape == (BATCH, NUM_CLASSES), out.shape

    ref = birnn_reference(raw, x)
    assert jnp.allclose(out, ref, atol=1e-5, rtol=1e-5), "mismatch vs reference"

    print("KERNEL_OK")
</pallas_src>

<mosaic_0001>
module attributes {stable_mosaic.version = 11 : i64} {
  func.func @_birnn_fused_kernel(%arg0: memref<8x64xf32, #tpu.memory_space<vmem>>, %arg1: memref<64x192xf32, #tpu.memory_space<vmem>>, %arg2: memref<1x192xf32, #tpu.memory_space<vmem>>, %arg3: memref<64x192xf32, #tpu.memory_space<vmem>>, %arg4: memref<1x192xf32, #tpu.memory_space<vmem>>, %arg5: memref<64x2xf32, #tpu.memory_space<vmem>>, %arg6: memref<1x2xf32, #tpu.memory_space<vmem>>, %arg7: memref<8x2xf32, #tpu.memory_space<vmem>>) attributes {dimension_semantics = [], scalar_prefetch = 0 : i64, scratch_operands = 0 : i64, tpu.core_type = #tpu.core_type<tc>} {
    %c0 = arith.constant 0 : index
    %c0_0 = arith.constant 0 : index
    %0 = vector.load %arg0[%c0, %c0_0] : memref<8x64xf32, #tpu.memory_space<vmem>>, vector<8x64xf32>
    %c0_1 = arith.constant 0 : index
    %c0_2 = arith.constant 0 : index
    %1 = vector.load %arg1[%c0_1, %c0_2] : memref<64x192xf32, #tpu.memory_space<vmem>>, vector<64x192xf32>
    %cst = arith.constant dense<0.000000e+00> : vector<8x192xf32>
    %2 = tpu.matmul %0, %1, %cst {dimension_numbers = #tpu.dot_dimension_numbers<[1], [0], [0], [1], [0, 0, 1, 1], [], []>} : vector<8x64xf32>, vector<64x192xf32>, vector<8x192xf32> -> vector<8x192xf32>
    %c0_3 = arith.constant 0 : index
    %c0_4 = arith.constant 0 : index
    %3 = vector.load %arg2[%c0_3, %c0_4] : memref<1x192xf32, #tpu.memory_space<vmem>>, vector<1x192xf32>
    %4 = vector.broadcast %3 : vector<1x192xf32> to vector<8x192xf32>
    %5 = arith.addf %2, %4 : vector<8x192xf32>
    %6 = vector.extract_strided_slice %5 {offsets = [0, 0], sizes = [8, 64], strides = [1, 1]} : vector<8x192xf32> to vector<8x64xf32>
    %7 = arith.negf %6 : vector<8x64xf32>
    %8 = math.exp %7 : vector<8x64xf32>
    %cst_5 = arith.constant 1.000000e+00 : f32
    %9 = vector.broadcast %cst_5 : f32 to vector<8x64xf32>
    %10 = arith.addf %9, %8 : vector<8x64xf32>
    %11 = arith.divf %9, %10 : vector<8x64xf32>
    %12 = vector.extract_strided_slice %5 {offsets = [0, 64], sizes = [8, 64], strides = [1, 1]} : vector<8x192xf32> to vector<8x64xf32>
    %13 = math.tanh %12 : vector<8x64xf32>
    %14 = vector.extract_strided_slice %5 {offsets = [0, 128], sizes = [8, 64], strides = [1, 1]} : vector<8x192xf32> to vector<8x64xf32>
    %15 = arith.negf %14 : vector<8x64xf32>
    %16 = math.exp %15 : vector<8x64xf32>
    %cst_6 = arith.constant 1.000000e+00 : f32
    %17 = vector.broadcast %cst_6 : f32 to vector<8x64xf32>
    %18 = arith.addf %17, %16 : vector<8x64xf32>
    %19 = arith.divf %17, %18 : vector<8x64xf32>
    %20 = arith.mulf %11, %13 : vector<8x64xf32>
    %21 = math.tanh %20 : vector<8x64xf32>
    %22 = arith.mulf %19, %21 : vector<8x64xf32>
    %c0_7 = arith.constant 0 : index
    %c0_8 = arith.constant 0 : index
    %23 = vector.load %arg3[%c0_7, %c0_8] : memref<64x192xf32, #tpu.memory_space<vmem>>, vector<64x192xf32>
    %cst_9 = arith.constant dense<0.000000e+00> : vector<8x192xf32>
    %24 = tpu.matmul %22, %23, %cst_9 {dimension_numbers = #tpu.dot_dimension_numbers<[1], [0], [0], [1], [0, 0, 1, 1], [], []>} : vector<8x64xf32>, vector<64x192xf32>, vector<8x192xf32> -> vector<8x192xf32>
    %c0_10 = arith.constant 0 : index
    %c0_11 = arith.constant 0 : index
    %25 = vector.load %arg4[%c0_10, %c0_11] : memref<1x192xf32, #tpu.memory_space<vmem>>, vector<1x192xf32>
    %26 = vector.broadcast %25 : vector<1x192xf32> to vector<8x192xf32>
    %27 = arith.addf %24, %26 : vector<8x192xf32>
    %28 = vector.extract_strided_slice %27 {offsets = [0, 0], sizes = [8, 64], strides = [1, 1]} : vector<8x192xf32> to vector<8x64xf32>
    %29 = arith.negf %28 : vector<8x64xf32>
    %30 = math.exp %29 : vector<8x64xf32>
    %cst_12 = arith.constant 1.000000e+00 : f32
    %31 = vector.broadcast %cst_12 : f32 to vector<8x64xf32>
    %32 = arith.addf %31, %30 : vector<8x64xf32>
    %33 = arith.divf %31, %32 : vector<8x64xf32>
    %34 = vector.extract_strided_slice %27 {offsets = [0, 64], sizes = [8, 64], strides = [1, 1]} : vector<8x192xf32> to vector<8x64xf32>
    %35 = math.tanh %34 : vector<8x64xf32>
    %36 = vector.extract_strided_slice %27 {offsets = [0, 128], sizes = [8, 64], strides = [1, 1]} : vector<8x192xf32> to vector<8x64xf32>
    %37 = arith.negf %36 : vector<8x64xf32>
    %38 = math.exp %37 : vector<8x64xf32>
    %cst_13 = arith.constant 1.000000e+00 : f32
    %39 = vector.broadcast %cst_13 : f32 to vector<8x64xf32>
    %40 = arith.addf %39, %38 : vector<8x64xf32>
    %41 = arith.divf %39, %40 : vector<8x64xf32>
    %42 = arith.mulf %33, %35 : vector<8x64xf32>
    %43 = math.tanh %42 : vector<8x64xf32>
    %44 = arith.mulf %41, %43 : vector<8x64xf32>
    %c0_14 = arith.constant 0 : index
    %c0_15 = arith.constant 0 : index
    %45 = vector.load %arg5[%c0_14, %c0_15] : memref<64x2xf32, #tpu.memory_space<vmem>>, vector<64x2xf32>
    %cst_16 = arith.constant dense<0.000000e+00> : vector<8x2xf32>
    %46 = tpu.matmul %44, %45, %cst_16 {dimension_numbers = #tpu.dot_dimension_numbers<[1], [0], [0], [1], [0, 0, 1, 1], [], []>} : vector<8x64xf32>, vector<64x2xf32>, vector<8x2xf32> -> vector<8x2xf32>
    %c0_17 = arith.constant 0 : index
    %c0_18 = arith.constant 0 : index
    %47 = vector.load %arg6[%c0_17, %c0_18] : memref<1x2xf32, #tpu.memory_space<vmem>>, vector<1x2xf32>
    %48 = vector.broadcast %47 : vector<1x2xf32> to vector<8x2xf32>
    %49 = arith.addf %46, %48 : vector<8x2xf32>
    %c0_19 = arith.constant 0 : index
    %c0_20 = arith.constant 0 : index
    %50 = vector.load %arg7[%c0_19, %c0_20] : memref<8x2xf32, #tpu.memory_space<vmem>>, vector<8x2xf32>
    tpu.vector_store %arg7[%c0_19, %c0_20], %49 {strides = array<i32>} : memref<8x2xf32, #tpu.memory_space<vmem>>, vector<8x2xf32>,
    return
  }
}

</mosaic_0001>

<llo_original>
// kernel: birnn_forward.1
$region0: #{birnn_forward.1}
  #allocation0 [shape = 'u32[]', space=smem, size = 0x4, offset = 0x4, fixed_abs, tag = 'smem constant byte address 0x4 - core index']
  #allocation1 [shape = 'u32[72,128]{1,0:T(1,128)}', space=vmem, size = 0x9000, scoped, tag = 'internal scratch']
  %s0 = inlined_call_operand.vmem [shape: f32[8,64], index: 0, kind: input, shape index: {}]
  %s1 = inlined_call_operand.hbm [shape: f32[64,192], index: 1, kind: input, shape index: {}]
  %s2 = inlined_call_operand.vmem [shape: f32[1,192], index: 2, kind: input, shape index: {}]
  %s3 = inlined_call_operand.hbm [shape: f32[64,192], index: 3, kind: input, shape index: {}]
  %s4 = inlined_call_operand.vmem [shape: f32[1,192], index: 4, kind: input, shape index: {}]
  %s5 = inlined_call_operand.vmem [shape: f32[64,2], index: 5, kind: input, shape index: {}]
  %s6 = inlined_call_operand.vmem [shape: f32[1,2], index: 6, kind: input, shape index: {}]
  %s7 = inlined_call_operand.vmem [shape: f32[8,2], index: 7, kind: output, shape index: {}]
  %s8 = sld [smem:[#allocation0]]
  $region46: #{birnn_forward.1} parent=0
    _
  %s10 = ssub.s32 1, %s8
  %s11 = scalar_select 0, %s10, %s8
  $region1: #{birnn_forward.1} parent=0
    #allocation2 [shape = 'u8[65536]{0}', space=vmem, size = 0x10000, scoped, tag = 'input window, operand 1, single buffered']
    #allocation3 [shape = 's32[1]{0}', space=sflag, size = 0x4, scoped, tag = 'scoped memory for birnn_forward.1']
    #allocation4 [shape = 'u8[65536]{0}', space=vmem, size = 0x10000, scoped, tag = 'input window, operand 3, single buffered']
    #allocation5 [shape = 's32[1]{0}', space=sflag, size = 0x4, scoped, tag = 'scoped memory for birnn_forward.1']
    %12 = vsyncpa [#allocation3], 0
    %13 = vsyncpa [#allocation5], 0
    // Predicated region
    $region2: #{birnn_forward.1} parent=1 // pred_check
      _
    $region3: #{birnn_forward.1} parent=1 // pred_check_branch
      %15 = sbr.rel (0) target = $region5
    $region4: #{birnn_forward.1} parent=1 // pred_region
      _
    $region5: #{birnn_forward.1} parent=1 // pred_fallthru
      _
    // Predicated region
    $region6: #{birnn_forward.1} parent=1 // pred_check
      _
    $region7: #{birnn_forward.1} parent=1 // pred_check_branch
      %17 = sbr.rel (0) target = $region9
    $region8: #{birnn_forward.1} parent=1 // pred_region
      %19 = vsyncadd [#allocation3], 0
      %s20 = sshll.u32 %s1, 4
      %s21 = int_to_ptr.hbm [resolvable:$true] %s20
      %s22 = sshll.u32 [#allocation2], 4
      %s23 = int_to_ptr.vmem [resolvable:$true] %s22
      %28 = dma.hbm_to_vmem [thread:$0]  %s21, 2048, %s23, [#allocation3], 256, 256, 16
    $region9: #{birnn_forward.1} parent=1 // pred_fallthru
      _
    // Predicated region
    $region10: #{birnn_forward.1} parent=1 // pred_check
      _
    $region11: #{birnn_forward.1} parent=1 // pred_check_branch
      %30 = sbr.rel (0) target = $region13
    $region12: #{birnn_forward.1} parent=1 // pred_region
      _
    $region13: #{birnn_forward.1} parent=1 // pred_fallthru
      _
    // Predicated region
    $region14: #{birnn_forward.1} parent=1 // pred_check
      _
    $region15: #{birnn_forward.1} parent=1 // pred_check_branch
      %32 = sbr.rel (0) target = $region17
    $region16: #{birnn_forward.1} parent=1 // pred_region
      %34 = vsyncadd [#allocation5], 0
      %s35 = sshll.u32 %s3, 4
      %s36 = int_to_ptr.hbm [resolvable:$true] %s35
      %s37 = sshll.u32 [#allocation4], 4
      %s38 = int_to_ptr.vmem [resolvable:$true] %s37
      %43 = dma.hbm_to_vmem [thread:$0]  %s36, 2048, %s38, [#allocation5], 256, 256, 16
    $region17: #{birnn_forward.1} parent=1 // pred_fallthru
      _
    // Predicated region
    $region18: #{birnn_forward.1} parent=1 // pred_check
      _
    $region19: #{birnn_forward.1} parent=1 // pred_check_branch
      %45 = sbr.rel (0) target = $region21
    $region20: #{birnn_forward.1} parent=1 // pred_region
      _
    $region21: #{birnn_forward.1} parent=1 // pred_fallthru
      _
    // Predicated region
    $region22: #{birnn_forward.1} parent=1 // pred_check
      _
    $region23: #{birnn_forward.1} parent=1 // pred_check_branch
      %47 = sbr.rel (0) target = $region25
    $region24: #{birnn_forward.1} parent=1 // pred_region
      _
    $region25: #{birnn_forward.1} parent=1 // pred_fallthru
      _
    // Predicated region
    $region26: #{birnn_forward.1} parent=1 // pred_check
      _
    $region27: #{birnn_forward.1} parent=1 // pred_check_branch
      %49 = sbr.rel (0) target = $region29
    $region28: #{birnn_forward.1} parent=1 // pred_region
      _
    $region29: #{birnn_forward.1} parent=1 // pred_fallthru
      _
    // Predicated region
    $region30: #{birnn_forward.1} parent=1 // pred_check
      _
    $region31: #{birnn_forward.1} parent=1 // pred_check_branch
      %51 = sbr.rel (0) target = $region33
    $region32: #{birnn_forward.1} parent=1 // pred_region
      %53 = dma.done [#allocation3], 2048
    $region33: #{birnn_forward.1} parent=1 // pred_fallthru
      _
    // Predicated region
    $region34: #{birnn_forward.1} parent=1 // pred_check
      _
    $region35: #{birnn_forward.1} parent=1 // pred_check_branch
      %55 = sbr.rel (0) target = $region37
    $region36: #{birnn_forward.1} parent=1 // pred_region
      %57 = dma.done [#allocation5], 2048
    $region37: #{birnn_forward.1} parent=1 // pred_fallthru
      _
    %v58 = vld [vmem:[%s0] sm:$0xff]
    %v59 = vld [vmem:[#allocation2] sm:$0xff]
    %v60 = vld [vmem:[#allocation2 + $0x8] sm:$0xff]
    %v61 = vld [vmem:[#allocation2 + $0x10] sm:$0xff]
    %v62 = vld [vmem:[#allocation2 + $0x18] sm:$0xff]
    %v63 = vld [vmem:[#allocation2 + $0x20] sm:$0xff]
    %v64 = vld [vmem:[#allocation2 + $0x28] sm:$0xff]
    %v65 = vld [vmem:[#allocation2 + $0x30] sm:$0xff]
    %v66 = vld [vmem:[#allocation2 + $0x38] sm:$0xff]
    %v67 = vld [vmem:[#allocation2 + $0x40] sm:$0xff]
    %v68 = vld [vmem:[#allocation2 + $0x48] sm:$0xff]
    %v69 = vld [vmem:[#allocation2 + $0x50] sm:$0xff]
    %v70 = vld [vmem:[#allocation2 + $0x58] sm:$0xff]
    %v71 = vld [vmem:[#allocation2 + $0x60] sm:$0xff]
    %v72 = vld [vmem:[#allocation2 + $0x68] sm:$0xff]
    %v73 = vld [vmem:[#allocation2 + $0x70] sm:$0xff]
    %v74 = vld [vmem:[#allocation2 + $0x78] sm:$0xff]
    %v75 = vld [vmem:[%s2] sm:$0x3]
    %v77 = vperm.slane %v75, 0
    %v78 = vperm.slane %v75, 1
    %vm81 = vcmask 523264
    %v83 = vsel %vm81, %v58, 0
    %85 = vmatpush.msra.mxu0 0.0
    %86 = vmatpush.msra.mxu0 0.0
    %87 = vmatpush.msra.mxu0 0.0
    %88 = vmatpush.msra.mxu0 0.0
    %89 = vmatpush.msra.mxu0 0.0
    %90 = vmatpush.msra.mxu0 0.0
    %91 = vmatpush.msra.mxu0 0.0
    %92 = vmatpush.msra.mxu0 0.0
    %93 = vmatpush.msra.mxu0 %v73
    %94 = vmatpush.msra.mxu0 %v71
    %95 = vmatpush.msra.mxu0 %v69
    %96 = vmatpush.msra.mxu0 %v67
    %97 = vmatpush.msra.mxu0 %v65
    %98 = vmatpush.msra.mxu0 %v63
    %99 = vmatpush.msra.mxu0 %v61
    %100 = vmatpush.msra.mxu0 %v59
    %101 = vmatmul.f32.gmra.mxu0 %v83
    %v102 = vpop.f32.mrf.mxu0
    %v103 = vadd.f32 %v77, %v102
    %104 = vdwg.mxu0
    %105 = vmatpush.msra.mxu0 0.0
    %106 = vmatpush.msra.mxu0 0.0
    %107 = vmatpush.msra.mxu0 0.0
    %108 = vmatpush.msra.mxu0 0.0
    %109 = vmatpush.msra.mxu0 0.0
    %110 = vmatpush.msra.mxu0 0.0
    %111 = vmatpush.msra.mxu0 0.0
    %112 = vmatpush.msra.mxu0 0.0
    %113 = vmatpush.msra.mxu0 %v74
    %114 = vmatpush.msra.mxu0 %v72
    %115 = vmatpush.msra.mxu0 %v70
    %116 = vmatpush.msra.mxu0 %v68
    %117 = vmatpush.msra.mxu0 %v66
    %118 = vmatpush.msra.mxu0 %v64
    %119 = vmatpush.msra.mxu0 %v62
    %120 = vmatpush.msra.mxu0 %v60
    %121 = vmatmul.f32.gmra.mxu0 %v83
    %v122 = vpop.f32.mrf.mxu0
    %v123 = vadd.f32 %v78, %v122
    %124 = vdwg.mxu0
    %v125 = vxor.u32 %v103, 2147483648
    %v126 = vmul.f32 %v125, 1.442695
    %v127 = vpow.pop %v126
    %v128 = vadd.f32 %v127, 1.0
    %v129 = vrcp.pop %v128
    %v130 = vmul.f32 %v128, %v129
    %v131 = vsub.f32 1.0, %v130
    %v132 = vmul.f32 %v129, %v131
    %v133 = vadd.f32 %v129, %v132
    %vm134 = vweird.f32 %v128
    %vm135 = vweird.f32 %v129
    %vm136 = vmor %vm134, %vm135
    %v137 = vsel %vm136, %v129, %v133
    %v138 = vand.u32 2147483647, %v128
    %vm139 = vcmp.eq.f32.partialorder %v138, 8.507059e+37
    %v140 = vand.u32 %v128, 2147483648
    %v141 = vor.u32 1.1754944e-38, %v140
    %v142 = vsel %vm139, %v141, %v137
    %v143 = vmul.f32 1.0, %v142
    %v144 = vtanh.pop %v103
    %v145 = vxor.u32 %v123, 2147483648
    %v146 = vmul.f32 %v145, 1.442695
    %v147 = vpow.pop %v146
    %v148 = vadd.f32 %v147, 1.0
    %v149 = vrcp.pop %v148
    %v150 = vmul.f32 %v148, %v149
    %v151 = vsub.f32 1.0, %v150
    %v152 = vmul.f32 %v149, %v151
    %v153 = vadd.f32 %v149, %v152
    %vm154 = vweird.f32 %v148
    %vm155 = vweird.f32 %v149
    %vm156 = vmor %vm154, %vm155
    %v157 = vsel %vm156, %v149, %v153
    %v158 = vand.u32 2147483647, %v148
    %vm159 = vcmp.eq.f32.partialorder %v158, 8.507059e+37
    %v160 = vand.u32 %v148, 2147483648
    %v161 = vor.u32 1.1754944e-38, %v160
    %v162 = vsel %vm159, %v161, %v157
    %v163 = vmul.f32 1.0, %v162
    %165 = vrot.lane.b32.xlu0 %v144, 64
    %v166 = vpop.permute.xlu0 %165
    %v168 = vmul.f32 %v143, %v166
    %v169 = vtanh.pop %v168
    %v170 = vmul.f32 %v163, %v169
    %v171 = vld [vmem:[#allocation4] sm:$0xff]
    %v172 = vld [vmem:[#allocation4 + $0x8] sm:$0xff]
    %v173 = vld [vmem:[#allocation4 + $0x10] sm:$0xff]
    %v174 = vld [vmem:[#allocation4 + $0x18] sm:$0xff]
    %v175 = vld [vmem:[#allocation4 + $0x20] sm:$0xff]
    %v176 = vld [vmem:[#allocation4 + $0x28] sm:$0xff]
    %v177 = vld [vmem:[#allocation4 + $0x30] sm:$0xff]
    %v178 = vld [vmem:[#allocation4 + $0x38] sm:$0xff]
    %v179 = vld [vmem:[#allocation4 + $0x40] sm:$0xff]
    %v180 = vld [vmem:[#allocation4 + $0x48] sm:$0xff]
    %v181 = vld [vmem:[#allocation4 + $0x50] sm:$0xff]
    %v182 = vld [vmem:[#allocation4 + $0x58] sm:$0xff]
    %v183 = vld [vmem:[#allocation4 + $0x60] sm:$0xff]
    %v184 = vld [vmem:[#allocation4 + $0x68] sm:$0xff]
    %v185 = vld [vmem:[#allocation4 + $0x70] sm:$0xff]
    %v186 = vld [vmem:[#allocation4 + $0x78] sm:$0xff]
    %v187 = vld [vmem:[%s4] sm:$0x3]
    %v189 = vperm.slane %v187, 0
    %v190 = vperm.slane %v187, 1
    %v194 = vsel %vm81, %v170, 0
    %196 = vmatpush.msra.mxu0 0.0
    %197 = vmatpush.msra.mxu0 0.0
    %198 = vmatpush.msra.mxu0 0.0
    %199 = vmatpush.msra.mxu0 0.0
    %200 = vmatpush.msra.mxu0 0.0
    %201 = vmatpush.msra.mxu0 0.0
    %202 = vmatpush.msra.mxu0 0.0
    %203 = vmatpush.msra.mxu0 0.0
    %204 = vmatpush.msra.mxu0 %v185
    %205 = vmatpush.msra.mxu0 %v183
    %206 = vmatpush.msra.mxu0 %v181
    %207 = vmatpush.msra.mxu0 %v179
    %208 = vmatpush.msra.mxu0 %v177
    %209 = vmatpush.msra.mxu0 %v175
    %210 = vmatpush.msra.mxu0 %v173
    %211 = vmatpush.msra.mxu0 %v171
    %212 = vmatmul.f32.gmra.mxu0 %v194
    %v213 = vpop.f32.mrf.mxu0
    %v214 = vadd.f32 %v189, %v213
    %215 = vdwg.mxu0
    %216 = vmatpush.msra.mxu0 0.0
    %217 = vmatpush.msra.mxu0 0.0
    %218 = vmatpush.msra.mxu0 0.0
    %219 = vmatpush.msra.mxu0 0.0
    %220 = vmatpush.msra.mxu0 0.0
    %221 = vmatpush.msra.mxu0 0.0
    %222 = vmatpush.msra.mxu0 0.0
    %223 = vmatpush.msra.mxu0 0.0
    %224 = vmatpush.msra.mxu0 %v186
    %225 = vmatpush.msra.mxu0 %v184
    %226 = vmatpush.msra.mxu0 %v182
    %227 = vmatpush.msra.mxu0 %v180
    %228 = vmatpush.msra.mxu0 %v178
    %229 = vmatpush.msra.mxu0 %v176
    %230 = vmatpush.msra.mxu0 %v174
    %231 = vmatpush.msra.mxu0 %v172
    %232 = vmatmul.f32.gmra.mxu0 %v194
    %v233 = vpop.f32.mrf.mxu0
    %v234 = vadd.f32 %v190, %v233
    %235 = vdwg.mxu0
    %v236 = vxor.u32 %v214, 2147483648
    %v237 = vmul.f32 %v236, 1.442695
    %v238 = vpow.pop %v237
    %v239 = vadd.f32 %v238, 1.0
    %v240 = vrcp.pop %v239
    %v241 = vmul.f32 %v239, %v240
    %v242 = vsub.f32 1.0, %v241
    %v243 = vmul.f32 %v240, %v242
    %v244 = vadd.f32 %v240, %v243
    %vm245 = vweird.f32 %v239
    %vm246 = vweird.f32 %v240
    %vm247 = vmor %vm245, %vm246
    %v248 = vsel %vm247, %v240, %v244
    %v249 = vand.u32 2147483647, %v239
    %vm250 = vcmp.eq.f32.partialorder %v249, 8.507059e+37
    %v251 = vand.u32 %v239, 2147483648
    %v252 = vor.u32 1.1754944e-38, %v251
    %v253 = vsel %vm250, %v252, %v248
    %v254 = vmul.f32 1.0, %v253
    %v255 = vtanh.pop %v214
    %v256 = vxor.u32 %v234, 2147483648
    %v257 = vmul.f32 %v256, 1.442695
    %v258 = vpow.pop %v257
    %v259 = vadd.f32 %v258, 1.0
    %v260 = vrcp.pop %v259
    %v261 = vmul.f32 %v259, %v260
    %v262 = vsub.f32 1.0, %v261
    %v263 = vmul.f32 %v260, %v262
    %v264 = vadd.f32 %v260, %v263
    %vm265 = vweird.f32 %v259
    %vm266 = vweird.f32 %v260
    %vm267 = vmor %vm265, %vm266
    %v268 = vsel %vm267, %v260, %v264
    %v269 = vand.u32 2147483647, %v259
    %vm270 = vcmp.eq.f32.partialorder %v269, 8.507059e+37
    %v271 = vand.u32 %v259, 2147483648
    %v272 = vor.u32 1.1754944e-38, %v271
    %v273 = vsel %vm270, %v272, %v268
    %v274 = vmul.f32 1.0, %v273
    %276 = vrot.lane.b32.xlu0 %v255, 64
    %v277 = vpop.permute.xlu0 %276
    %v279 = vmul.f32 %v254, %v277
    %v280 = vtanh.pop %v279
    %v281 = vmul.f32 %v274, %v280
    %v282 = vld [vmem:[%s5] sm:$0xff]
    %v283 = vld [vmem:[%s5 + $0x8] sm:$0xff]
    %v284 = vld [vmem:[%s5 + $0x10] sm:$0xff]
    %v285 = vld [vmem:[%s5 + $0x18] sm:$0xff]
    %v286 = vld [vmem:[%s5 + $0x20] sm:$0xff]
    %v287 = vld [vmem:[%s5 + $0x28] sm:$0xff]
    %v288 = vld [vmem:[%s5 + $0x30] sm:$0xff]
    %v289 = vld [vmem:[%s5 + $0x38] sm:$0xff]
    %v290 = vld [vmem:[%s6] sm:$0x1]
    %v292 = vperm.slane %v290, 0
    %v295 = vsel %vm81, %v281, 0
    %297 = vmatpush.msra.mxu0 0.0
    %298 = vmatpush.msra.mxu0 0.0
    %299 = vmatpush.msra.mxu0 0.0
    %300 = vmatpush.msra.mxu0 0.0
    %301 = vmatpush.msra.mxu0 0.0
    %302 = vmatpush.msra.mxu0 0.0
    %303 = vmatpush.msra.mxu0 0.0
    %304 = vmatpush.msra.mxu0 0.0
    %305 = vmatpush.msra.mxu0 %v289
    %306 = vmatpush.msra.mxu0 %v288
    %307 = vmatpush.msra.mxu0 %v287
    %308 = vmatpush.msra.mxu0 %v286
    %309 = vmatpush.msra.mxu0 %v285
    %310 = vmatpush.msra.mxu0 %v284
    %311 = vmatpush.msra.mxu0 %v283
    %312 = vmatpush.msra.mxu0 %v282
    %313 = vmatmul.f32.gmra.mxu0 %v295
    %v314 = vpop.f32.mrf.mxu0
    %v315 = vadd.f32 %v292, %v314
    %316 = vdwg.mxu0
    %vm317 = vcmask 15360
    %318 = vst.msk [vmem:[%s7] sm:$0xff] %vm317, %v315
    // Predicated region
    $region38: #{birnn_forward.1} parent=1 // pred_check
      _
    $region39: #{birnn_forward.1} parent=1 // pred_check_branch
      %320 = sbr.rel (0) target = $region41
    $region40: #{birnn_forward.1} parent=1 // pred_region
      _
    $region41: #{birnn_forward.1} parent=1 // pred_fallthru
      _
    // Predicated region
    $region42: #{birnn_forward.1} parent=1 // pred_check
      _
    $region43: #{birnn_forward.1} parent=1 // pred_check_branch
      %322 = sbr.rel (0) target = $region45
    $region44: #{birnn_forward.1} parent=1 // pred_region
      _
    $region45: #{birnn_forward.1} parent=1 // pred_fallthru
      _
    %323 = vsyncpa [#allocation3], 1
    %324 = vsyncpa [#allocation5], 1

</llo_original>
